<compile_context>
chip_gen: v7x
topology: tpu7x:2x2x1
jax: 0.10.0
libtpu: 0.0.40
codegen_flags: <defaults>
</compile_context>

<pallas_src>
import functools

import jax
import jax.numpy as jnp
from jax.experimental import pallas as pl
from jax.experimental.pallas import tpu as pltpu


def _round_up(x, m):
    return (x + m - 1) // m * m


# ----------------------- fused small-graph kernel (1 launch) ----------------------- #

def _fused_two_layer_kernel(adj_ref, x_ref, wl1_ref, wr1_ref, b1_ref,
                            wl2_ref, wr2_ref, b2_ref, out_ref):
    """Whole 2-layer GraphSAGE forward; all operands resident in VMEM."""
    adj = adj_ref[...]
    x = x_ref[...]

    # conv1: mean-aggregate, project (lin_l), add root term (lin_r) + bias, ReLU.
    agg1 = jnp.dot(adj, x, preferred_element_type=jnp.float32)
    h = (jnp.dot(agg1.astype(jnp.bfloat16), wl1_ref[...],
                 preferred_element_type=jnp.float32)
         + jnp.dot(x, wr1_ref[...], preferred_element_type=jnp.float32)
         + b1_ref[...])
    h = jnp.maximum(h, 0.0).astype(jnp.bfloat16)
    # TODO(synk): F.dropout(p=0.5) implemented with inference semantics (identity).

    # conv2 (no activation).
    agg2 = jnp.dot(adj, h, preferred_element_type=jnp.float32)
    out = (jnp.dot(agg2.astype(jnp.bfloat16), wl2_ref[...],
                   preferred_element_type=jnp.float32)
           + jnp.dot(h, wr2_ref[...], preferred_element_type=jnp.float32)
           + b2_ref[...])
    out_ref[...] = out.astype(out_ref.dtype)


def graph_sage_fused_pallas(adj, x, wl1, wr1, b1, wl2, wr2, b2):
    n_pad = adj.shape[0]
    out_pad = wl2.shape[1]
    args = (adj, x, wl1, wr1, b1, wl2, wr2, b2)
    return pl.pallas_call(
        _fused_two_layer_kernel,
        out_shape=jax.ShapeDtypeStruct((n_pad, out_pad), jnp.float32),
        grid=(1,),
        in_specs=[pl.BlockSpec(a.shape, lambda i: (0, 0)) for a in args],
        out_specs=pl.BlockSpec((n_pad, out_pad), lambda i: (0, 0)),
        compiler_params=pltpu.CompilerParams(
            dimension_semantics=("arbitrary",)),
    )(*args)


# ------------------------- tiled per-layer kernel (large N) ------------------------ #

def _sage_layer_body(adj_ref, y_ref, xi_ref, wl_ref, wr_ref, b_ref,
                     out_ref, acc_ref, *, apply_relu, y_resident, tk):
    """One (row-tile i, reduction-tile k) step of a SAGEConv layer.

    acc accumulates A @ y over k, where y = x (aggregate-first, wl_ref != None)
    or y = x @ Wl^T precomputed outside the kernel (project-first, wl_ref == None).
    Finalize adds the root/skip term x @ Wr^T + bias (+ ReLU) and writes the tile.
    """
    k = pl.program_id(1)

    @pl.when(k == 0)
    def _init():
        acc_ref[...] = jnp.zeros_like(acc_ref)

    if y_resident:
        start = pl.multiple_of(k * tk, tk)
        yk = y_ref[pl.ds(start, tk), :]          # resident y: slice, no re-DMA
    else:
        yk = y_ref[...]

    acc_ref[...] += jnp.dot(adj_ref[...], yk, preferred_element_type=jnp.float32)

    @pl.when(k == pl.num_programs(1) - 1)
    def _finalize():
        neigh = acc_ref[...]
        if wl_ref is not None:                    # aggregate-first: project now
            neigh = jnp.dot(neigh.astype(jnp.bfloat16), wl_ref[...],
                            preferred_element_type=jnp.float32)
        out = (neigh
               + jnp.dot(xi_ref[...], wr_ref[...],
                         preferred_element_type=jnp.float32)
               + b_ref[...])
        if apply_relu:
            out = jnp.maximum(out, 0.0)
        out_ref[...] = out.astype(out_ref.dtype)


def sage_conv_pallas(adj, y, x, wl_t, wr_t, b, *, apply_relu, out_dtype,
                     tm, tk, y_resident, vmem_limit_bytes):
    """One SAGEConv layer (mean aggregation) on padded inputs.

    adj  : [Np, Np] bf16 row-normalized adjacency (Np multiple of tm and tk)
    y    : [Np, Fy] bf16 reduction operand (x, or x @ Wl^T if wl_t is None)
    x    : [Np, Fi] bf16 node features for the root/skip term
    wl_t : [Fi, Fo] bf16 pre-transposed lin_l weight, or None (project-first path)
    wr_t : [Fi, Fo] bf16 pre-transposed lin_r weight
    b    : [1,  Fo] f32 lin_l bias
    """
    n_pad = adj.shape[0]
    f_y = y.shape[1]
    fin = x.shape[1]
    fout = wr_t.shape[1]
    project_after = wl_t is not None

    if y_resident:
        y_spec = pl.BlockSpec((n_pad, f_y), lambda i, k: (0, 0))   # DMA'd once
    else:
        y_spec = pl.BlockSpec((tk, f_y), lambda i, k: (k, 0))      # streamed per k

    in_specs = [
        pl.BlockSpec((tm, tk), lambda i, k: (i, k)),       # adj tile (streamed)
        y_spec,                                            # reduction operand
        pl.BlockSpec((tm, fin), lambda i, k: (i, 0)),      # root/skip rows
    ]
    operands = [adj, y, x]
    if project_after:
        in_specs.append(pl.BlockSpec((f_y, fout), lambda i, k: (0, 0)))  # Wl^T
        operands.append(wl_t)
    in_specs += [
        pl.BlockSpec((fin, fout), lambda i, k: (0, 0)),    # Wr^T (resident)
        pl.BlockSpec((1, fout), lambda i, k: (0, 0)),      # bias  (resident)
    ]
    operands += [wr_t, b]

    if project_after:
        def kernel(adj_r, y_r, xi_r, wl_r, wr_r, b_r, out_r, acc_r):
            _sage_layer_body(adj_r, y_r, xi_r, wl_r, wr_r, b_r, out_r, acc_r,
                             apply_relu=apply_relu, y_resident=y_resident, tk=tk)
    else:
        def kernel(adj_r, y_r, xi_r, wr_r, b_r, out_r, acc_r):
            _sage_layer_body(adj_r, y_r, xi_r, None, wr_r, b_r, out_r, acc_r,
                             apply_relu=apply_relu, y_resident=y_resident, tk=tk)

    return pl.pallas_call(
        kernel,
        out_shape=jax.ShapeDtypeStruct((n_pad, fout), out_dtype),
        grid=(n_pad // tm, n_pad // tk),
        in_specs=in_specs,
        out_specs=pl.BlockSpec((tm, fout), lambda i, k: (i, 0)),
        scratch_shapes=[pltpu.VMEM((tm, f_y), jnp.float32)],
        compiler_params=pltpu.CompilerParams(
            dimension_semantics=("parallel", "arbitrary"),
            vmem_limit_bytes=vmem_limit_bytes),
    )(*operands)


# --------------------------------- glue (JAX) --------------------------------- #

def build_norm_adj(edge_index, n_pad):
    """Row-normalized dense adjacency (bf16): A[dst, src] += 1, rows / in-degree."""
    src = edge_index[0]
    dst = edge_index[1]
    adj = jnp.zeros((n_pad, n_pad), jnp.float32).at[dst, src].add(1.0)
    deg = adj.sum(axis=1, keepdims=True)
    return (adj / jnp.maximum(deg, 1.0)).astype(jnp.bfloat16)


def _pad2(a, rows, cols, dtype):
    out = jnp.zeros((rows, cols), dtype)
    return out.at[:a.shape[0], :a.shape[1]].set(a.astype(dtype))


def _prep_weight(w):
    """PyTorch-style [Fout, Fin] -> lane-dense pre-transposed bf16 [Fin_pad, Fout_pad]."""
    fout, fin = w.shape
    return _pad2(w.T, _round_up(fin, 128), _round_up(fout, 128), jnp.bfloat16)


def _prep_bias(b):
    """[1, Fout] -> f32 [1, Fout_pad]."""
    return _pad2(b, 1, _round_up(b.shape[1], 128), jnp.float32)


def _plan_large(n, f_max):
    """Tile / residency / VMEM plan for the tiled (large-N) path."""
    n_pad = _round_up(n, 512)
    if n_pad % 2048 == 0:
        tk = 2048
    elif n_pad % 1024 == 0:
        tk = 1024
    else:
        tk = 512
    # Keep the reduction operand resident in VMEM when (double-buffered) it is small.
    y_resident = 2 * n_pad * f_max * 2 <= (12 << 20)
    # If y must be streamed per row tile, raise tm so re-stream traffic <= ~12% of adj.
    tm = 1024 if (not y_resident and n_pad % 1024 == 0 and n_pad // 1024 >= 2) else 512
    # (n_pad >= 1536 here, so tm=512 always yields >= 2 row tiles for v7x megacore.)

    est = (2 * tm * tk * 2                                              # adj dbl-buf
           + (2 * n_pad * f_max * 2 if y_resident else 2 * tk * f_max * 2)
           + 2 * tm * f_max * 2                                         # skip rows
           + 6 * f_max * f_max * 2                                      # weights/bias
           + tm * f_max * 4                                             # accumulator
           + 2 * tm * f_max * 4)                                        # output
    vmem_limit = int(min(max(2 * est, 16 << 20), 48 << 20))             # v7x-safe cap
    return n_pad, tm, tk, y_resident, vmem_limit


def init_params(key, input_dim, hidden_dim, output_dim):
    def linear_w(k, out_d, in_d):
        bound = 1.0 / jnp.sqrt(jnp.float32(in_d))
        return jax.random.uniform(k, (out_d, in_d), jnp.float32, -bound, bound)

    ks = jax.random.split(key, 6)
    return {
        # conv1: lin_l (with bias), lin_r (no bias)
        "w_l1": linear_w(ks[0], hidden_dim, input_dim),
        "b_l1": jax.random.uniform(ks[1], (1, hidden_dim), jnp.float32,
                                   -1.0 / jnp.sqrt(jnp.float32(input_dim)),
                                   1.0 / jnp.sqrt(jnp.float32(input_dim))),
        "w_r1": linear_w(ks[2], hidden_dim, input_dim),
        # conv2
        "w_l2": linear_w(ks[3], output_dim, hidden_dim),
        "b_l2": jax.random.uniform(ks[4], (1, output_dim), jnp.float32,
                                   -1.0 / jnp.sqrt(jnp.float32(hidden_dim)),
                                   1.0 / jnp.sqrt(jnp.float32(hidden_dim))),
        "w_r2": linear_w(ks[5], output_dim, hidden_dim),
    }


def graph_sage_forward(params, x, edge_index):
    n, fin = x.shape
    hid = params["w_l1"].shape[0]
    fout = params["w_l2"].shape[0]
    fin_p, hid_p, out_p = (_round_up(d, 128) for d in (fin, hid, fout))

    wl1, wr1, bl1 = (_prep_weight(params["w_l1"]), _prep_weight(params["w_r1"]),
                     _prep_bias(params["b_l1"]))
    wl2, wr2, bl2 = (_prep_weight(params["w_l2"]), _prep_weight(params["w_r2"]),
                     _prep_bias(params["b_l2"]))

    n_small = _round_up(n, 128)
    if n_small <= 1024:
        # Small graph: both layers in ONE kernel; adj, x, h stay resident in VMEM.
        adj = build_norm_adj(edge_index, n_small)
        x_p = _pad2(x, n_small, fin_p, jnp.bfloat16)
        out = graph_sage_fused_pallas(adj, x_p, wl1, wr1, bl1, wl2, wr2, bl2)
        return out[:n, :fout]

    # Large graph: tiled per-layer kernels.
    # TODO(synk): for very sparse large graphs, block-skip empty adjacency tiles
    # via PrefetchScalarGridSpec (data-dependent k) instead of the dense N^2 stream.
    f_max = max(fin_p, hid_p, out_p)
    n_pad, tm, tk, y_resident, vmem_limit = _plan_large(n, f_max)
    adj = build_norm_adj(edge_index, n_pad)
    x_p = _pad2(x, n_pad, fin_p, jnp.bfloat16)
    common = dict(tm=tm, tk=tk, y_resident=y_resident,
                  vmem_limit_bytes=vmem_limit)

    # Layer 1: aggregate-first if hid_p >= fin_p, else hoist x @ Wl^T out of the loop.
    if hid_p >= fin_p:
        h = sage_conv_pallas(adj, x_p, x_p, wl1, wr1, bl1, apply_relu=True,
                             out_dtype=jnp.bfloat16, **common)
    else:
        y1 = jnp.dot(x_p, wl1, preferred_element_type=jnp.float32).astype(jnp.bfloat16)
        h = sage_conv_pallas(adj, y1, x_p, None, wr1, bl1, apply_relu=True,
                             out_dtype=jnp.bfloat16, **common)
    # TODO(synk): F.dropout(p=0.5) implemented with inference semantics (identity).

    # Layer 2.
    if out_p >= hid_p:
        out = sage_conv_pallas(adj, h, h, wl2, wr2, bl2, apply_relu=False,
                               out_dtype=jnp.float32, **common)
    else:
        y2 = jnp.dot(h, wl2, preferred_element_type=jnp.float32).astype(jnp.bfloat16)
        out = sage_conv_pallas(adj, y2, h, None, wr2, bl2, apply_relu=False,
                               out_dtype=jnp.float32, **common)
    return out[:n, :fout]


# ------------------------------------ main ------------------------------------- #

if __name__ == "__main__":
    key = jax.random.PRNGKey(0)
    k_x, k_e, k_p = jax.random.split(key, 3)

    num_nodes = 16
    num_edges = 40
    input_dim, hidden_dim, output_dim = 16, 32, 8

    x = jax.random.normal(k_x, (num_nodes, input_dim), jnp.float32)
    edge_index = jax.random.randint(k_e, (2, num_edges), 0, num_nodes,
                                    dtype=jnp.int32)
    params = init_params(k_p, input_dim, hidden_dim, output_dim)

    out = graph_sage_forward(params, x, edge_index)
    jax.block_until_ready(out)

    assert out.shape == (num_nodes, output_dim)
    assert jnp.all(jnp.isfinite(out))
    print("KERNEL_OK")
</pallas_src>

<mosaic_0001>
module attributes {stable_mosaic.version = 11 : i64} {
  func.func @_fused_two_layer_kernel(%arg0: i32, %arg1: memref<128x128xbf16, #tpu.memory_space<vmem>>, %arg2: memref<128x128xbf16, #tpu.memory_space<vmem>>, %arg3: memref<128x128xbf16, #tpu.memory_space<vmem>>, %arg4: memref<128x128xbf16, #tpu.memory_space<vmem>>, %arg5: memref<1x128xf32, #tpu.memory_space<vmem>>, %arg6: memref<128x128xbf16, #tpu.memory_space<vmem>>, %arg7: memref<128x128xbf16, #tpu.memory_space<vmem>>, %arg8: memref<1x128xf32, #tpu.memory_space<vmem>>, %arg9: memref<128x128xf32, #tpu.memory_space<vmem>>) attributes {dimension_semantics = [#tpu.dimension_semantics<arbitrary>], iteration_bounds = array<i64: 1>, scalar_prefetch = 0 : i64, scratch_operands = 0 : i64, tpu.core_type = #tpu.core_type<tc>, window_params = [{pipeline_mode = #tpu.pipeline_mode<synchronous>, transform_indices = @transform_0, window_bounds = array<i64: 128, 128>}, {pipeline_mode = #tpu.pipeline_mode<synchronous>, transform_indices = @transform_1, window_bounds = array<i64: 128, 128>}, {pipeline_mode = #tpu.pipeline_mode<synchronous>, transform_indices = @transform_2, window_bounds = array<i64: 128, 128>}, {pipeline_mode = #tpu.pipeline_mode<synchronous>, transform_indices = @transform_3, window_bounds = array<i64: 128, 128>}, {pipeline_mode = #tpu.pipeline_mode<synchronous>, transform_indices = @transform_4, window_bounds = array<i64: 1, 128>}, {pipeline_mode = #tpu.pipeline_mode<synchronous>, transform_indices = @transform_5, window_bounds = array<i64: 128, 128>}, {pipeline_mode = #tpu.pipeline_mode<synchronous>, transform_indices = @transform_6, window_bounds = array<i64: 128, 128>}, {pipeline_mode = #tpu.pipeline_mode<synchronous>, transform_indices = @transform_7, window_bounds = array<i64: 1, 128>}, {pipeline_mode = #tpu.pipeline_mode<synchronous>, transform_indices = @transform_8, window_bounds = array<i64: 128, 128>}]} {
    %c0 = arith.constant 0 : index
    %c0_0 = arith.constant 0 : index
    %0 = vector.load %arg1[%c0, %c0_0] : memref<128x128xbf16, #tpu.memory_space<vmem>>, vector<128x128xbf16>
    %c0_1 = arith.constant 0 : index
    %c0_2 = arith.constant 0 : index
    %1 = vector.load %arg2[%c0_1, %c0_2] : memref<128x128xbf16, #tpu.memory_space<vmem>>, vector<128x128xbf16>
    %cst = arith.constant dense<0.000000e+00> : vector<128x128xf32>
    %2 = tpu.matmul %0, %1, %cst {dimension_numbers = #tpu.dot_dimension_numbers<[1], [0], [0], [1], [0, 0, 1, 1], [], []>} : vector<128x128xbf16>, vector<128x128xbf16>, vector<128x128xf32> -> vector<128x128xf32>
    %3 = arith.truncf %2 : vector<128x128xf32> to vector<128x128xbf16>
    %c0_3 = arith.constant 0 : index
    %c0_4 = arith.constant 0 : index
    %4 = vector.load %arg3[%c0_3, %c0_4] : memref<128x128xbf16, #tpu.memory_space<vmem>>, vector<128x128xbf16>
    %cst_5 = arith.constant dense<0.000000e+00> : vector<128x128xf32>
    %5 = tpu.matmul %3, %4, %cst_5 {dimension_numbers = #tpu.dot_dimension_numbers<[1], [0], [0], [1], [0, 0, 1, 1], [], []>} : vector<128x128xbf16>, vector<128x128xbf16>, vector<128x128xf32> -> vector<128x128xf32>
    %c0_6 = arith.constant 0 : index
    %c0_7 = arith.constant 0 : index
    %6 = vector.load %arg4[%c0_6, %c0_7] : memref<128x128xbf16, #tpu.memory_space<vmem>>, vector<128x128xbf16>
    %cst_8 = arith.constant dense<0.000000e+00> : vector<128x128xf32>
    %7 = tpu.matmul %1, %6, %cst_8 {dimension_numbers = #tpu.dot_dimension_numbers<[1], [0], [0], [1], [0, 0, 1, 1], [], []>} : vector<128x128xbf16>, vector<128x128xbf16>, vector<128x128xf32> -> vector<128x128xf32>
    %8 = arith.addf %5, %7 : vector<128x128xf32>
    %c0_9 = arith.constant 0 : index
    %c0_10 = arith.constant 0 : index
    %9 = vector.load %arg5[%c0_9, %c0_10] : memref<1x128xf32, #tpu.memory_space<vmem>>, vector<1x128xf32>
    %10 = vector.broadcast %9 : vector<1x128xf32> to vector<128x128xf32>
    %11 = arith.addf %8, %10 : vector<128x128xf32>
    %cst_11 = arith.constant 0.000000e+00 : f32
    %12 = vector.broadcast %cst_11 : f32 to vector<128x128xf32>
    %13 = arith.maximumf %11, %12 : vector<128x128xf32>
    %14 = arith.truncf %13 : vector<128x128xf32> to vector<128x128xbf16>
    %cst_12 = arith.constant dense<0.000000e+00> : vector<128x128xf32>
    %15 = tpu.matmul %0, %14, %cst_12 {dimension_numbers = #tpu.dot_dimension_numbers<[1], [0], [0], [1], [0, 0, 1, 1], [], []>} : vector<128x128xbf16>, vector<128x128xbf16>, vector<128x128xf32> -> vector<128x128xf32>
    %16 = arith.truncf %15 : vector<128x128xf32> to vector<128x128xbf16>
    %c0_13 = arith.constant 0 : index
    %c0_14 = arith.constant 0 : index
    %17 = vector.load %arg6[%c0_13, %c0_14] : memref<128x128xbf16, #tpu.memory_space<vmem>>, vector<128x128xbf16>
    %cst_15 = arith.constant dense<0.000000e+00> : vector<128x128xf32>
    %18 = tpu.matmul %16, %17, %cst_15 {dimension_numbers = #tpu.dot_dimension_numbers<[1], [0], [0], [1], [0, 0, 1, 1], [], []>} : vector<128x128xbf16>, vector<128x128xbf16>, vector<128x128xf32> -> vector<128x128xf32>
    %c0_16 = arith.constant 0 : index
    %c0_17 = arith.constant 0 : index
    %19 = vector.load %arg7[%c0_16, %c0_17] : memref<128x128xbf16, #tpu.memory_space<vmem>>, vector<128x128xbf16>
    %cst_18 = arith.constant dense<0.000000e+00> : vector<128x128xf32>
    %20 = tpu.matmul %14, %19, %cst_18 {dimension_numbers = #tpu.dot_dimension_numbers<[1], [0], [0], [1], [0, 0, 1, 1], [], []>} : vector<128x128xbf16>, vector<128x128xbf16>, vector<128x128xf32> -> vector<128x128xf32>
    %21 = arith.addf %18, %20 : vector<128x128xf32>
    %c0_19 = arith.constant 0 : index
    %c0_20 = arith.constant 0 : index
    %22 = vector.load %arg8[%c0_19, %c0_20] : memref<1x128xf32, #tpu.memory_space<vmem>>, vector<1x128xf32>
    %23 = vector.broadcast %22 : vector<1x128xf32> to vector<128x128xf32>
    %24 = arith.addf %21, %23 : vector<128x128xf32>
    %c0_21 = arith.constant 0 : index
    %c0_22 = arith.constant 0 : index
    %25 = vector.load %arg9[%c0_21, %c0_22] : memref<128x128xf32, #tpu.memory_space<vmem>>, vector<128x128xf32>
    tpu.vector_store %arg9[%c0_21, %c0_22], %24 {strides = array<i32>} : memref<128x128xf32, #tpu.memory_space<vmem>>, vector<128x128xf32>,
    return
  }
  func.func @transform_0(%arg0: i32) -> (i32, i32) {
    %c0_i32 = arith.constant 0 : i32
    %c0_i32_0 = arith.constant 0 : i32
    %c0_i32_1 = arith.constant 0 : i32
    return %c0_i32, %c0_i32_0 : i32, i32
  }
  func.func @transform_1(%arg0: i32) -> (i32, i32) {
    %c0_i32 = arith.constant 0 : i32
    %c0_i32_0 = arith.constant 0 : i32
    %c0_i32_1 = arith.constant 0 : i32
    return %c0_i32, %c0_i32_0 : i32, i32
  }
  func.func @transform_2(%arg0: i32) -> (i32, i32) {
    %c0_i32 = arith.constant 0 : i32
    %c0_i32_0 = arith.constant 0 : i32
    %c0_i32_1 = arith.constant 0 : i32
    return %c0_i32, %c0_i32_0 : i32, i32
  }
  func.func @transform_3(%arg0: i32) -> (i32, i32) {
    %c0_i32 = arith.constant 0 : i32
    %c0_i32_0 = arith.constant 0 : i32
    %c0_i32_1 = arith.constant 0 : i32
    return %c0_i32, %c0_i32_0 : i32, i32
  }
  func.func @transform_4(%arg0: i32) -> (i32, i32) {
    %c0_i32 = arith.constant 0 : i32
    %c0_i32_0 = arith.constant 0 : i32
    %c0_i32_1 = arith.constant 0 : i32
    return %c0_i32, %c0_i32_0 : i32, i32
  }
  func.func @transform_5(%arg0: i32) -> (i32, i32) {
    %c0_i32 = arith.constant 0 : i32
    %c0_i32_0 = arith.constant 0 : i32
    %c0_i32_1 = arith.constant 0 : i32
    return %c0_i32, %c0_i32_0 : i32, i32
  }
  func.func @transform_6(%arg0: i32) -> (i32, i32) {
    %c0_i32 = arith.constant 0 : i32
    %c0_i32_0 = arith.constant 0 : i32
    %c0_i32_1 = arith.constant 0 : i32
    return %c0_i32, %c0_i32_0 : i32, i32
  }
  func.func @transform_7(%arg0: i32) -> (i32, i32) {
    %c0_i32 = arith.constant 0 : i32
    %c0_i32_0 = arith.constant 0 : i32
    %c0_i32_1 = arith.constant 0 : i32
    return %c0_i32, %c0_i32_0 : i32, i32
  }
  func.func @transform_8(%arg0: i32) -> (i32, i32) {
    %c0_i32 = arith.constant 0 : i32
    %c0_i32_0 = arith.constant 0 : i32
    %c0_i32_1 = arith.constant 0 : i32
    return %c0_i32, %c0_i32_0 : i32, i32
  }
}

</mosaic_0001>

<llo_original>
// kernel: tpu_custom_call.1
$region0: #{tpu_custom_call.1}
  #allocation0 [shape = 'u32[]', space=smem, size = 0x4, offset = 0x4, fixed_abs, tag = 'smem constant byte address 0x4 - core index']
  #allocation1 [shape = 'u32[144,128]{1,0:T(1,128)}', space=vmem, size = 0x12000, scoped, tag = 'internal scratch']
  %s0 = inlined_call_operand.hbm [shape: bf16[128,128], index: 0, kind: input, shape index: {}]
  %s1 = inlined_call_operand.hbm [shape: bf16[128,128], index: 1, kind: input, shape index: {}]
  %s2 = inlined_call_operand.hbm [shape: bf16[128,128], index: 2, kind: input, shape index: {}]
  %s3 = inlined_call_operand.hbm [shape: bf16[128,128], index: 3, kind: input, shape index: {}]
  %s4 = inlined_call_operand.vmem [shape: f32[1,128], index: 4, kind: input, shape index: {}]
  %s5 = inlined_call_operand.hbm [shape: bf16[128,128], index: 5, kind: input, shape index: {}]
  %s6 = inlined_call_operand.hbm [shape: bf16[128,128], index: 6, kind: input, shape index: {}]
  %s7 = inlined_call_operand.vmem [shape: f32[1,128], index: 7, kind: input, shape index: {}]
  %s8 = inlined_call_operand.hbm [shape: f32[128,128], index: 8, kind: output, shape index: {}]
  %s9 = sld [smem:[#allocation0]]
  $region66: #{tpu_custom_call.1} parent=0
    _
  %s11 = ssub.s32 1, %s9
  %s12 = scalar_select 0, %s11, %s9
  $region1: #{tpu_custom_call.1} parent=0
    #allocation2 [shape = 'u8[32768]{0}', space=vmem, size = 0x8000, scoped, tag = 'input window, operand 0, single buffered']
    #allocation3 [shape = 's32[1]{0}', space=sflag, size = 0x4, scoped, tag = 'scoped memory for tpu_custom_call.1']
    #allocation4 [shape = 's32[1]{0}', space=sflag, size = 0x4, scoped, tag = 'scoped memory for tpu_custom_call.1']
    #allocation5 [shape = 'u8[32768]{0}', space=vmem, size = 0x8000, scoped, tag = 'input window, operand 1, single buffered']
    #allocation6 [shape = 's32[1]{0}', space=sflag, size = 0x4, scoped, tag = 'scoped memory for tpu_custom_call.1']
    #allocation7 [shape = 'u8[32768]{0}', space=vmem, size = 0x8000, scoped, tag = 'input window, operand 2, single buffered']
    #allocation8 [shape = 'u8[32768]{0}', space=vmem, size = 0x8000, scoped, tag = 'input window, operand 3, single buffered']
    #allocation9 [shape = 's32[1]{0}', space=sflag, size = 0x4, scoped, tag = 'scoped memory for tpu_custom_call.1']
    #allocation10 [shape = 'u8[32768]{0}', space=vmem, size = 0x8000, scoped, tag = 'input window, operand 5, single buffered']
    #allocation11 [shape = 'u8[32768]{0}', space=vmem, size = 0x8000, scoped, tag = 'input window, operand 6, single buffered']
    #allocation12 [shape = 's32[1]{0}', space=sflag, size = 0x4, scoped, tag = 'scoped memory for tpu_custom_call.1']
    #allocation13 [shape = 'u8[65536]{0}', space=vmem, size = 0x10000, scoped, tag = 'output window, operand 0, single buffered']
    %13 = vsyncpa [#allocation3], 0
    %14 = vsyncpa [#allocation6], 0
    %15 = vsyncpa [#allocation9], 0
    %16 = vsyncpa [#allocation12], 0
    %17 = vsyncpa [#allocation4], 0
    // Predicated region
    $region2: #{tpu_custom_call.1} parent=1 // pred_check
      _
    $region3: #{tpu_custom_call.1} parent=1 // pred_check_branch
      %19 = sbr.rel (0) target = $region5
    $region4: #{tpu_custom_call.1} parent=1 // pred_region
      %s21 = ssub.s32 1024, 1024
      %22 = vsyncadd [#allocation3], %s21
      %s23 = sshll.u32 [#allocation2], 4
      %s24 = int_to_ptr.vmem [resolvable:$true] %s23
      %29 = dma.hbm_to_vmem [thread:$0]  %s0, 1024, %s24, [#allocation3], 64, 64, 4
    $region5: #{tpu_custom_call.1} parent=1 // pred_fallthru
      _
    // Predicated region
    $region6: #{tpu_custom_call.1} parent=1 // pred_check
      _
    $region7: #{tpu_custom_call.1} parent=1 // pred_check_branch
      %31 = sbr.rel (0) target = $region9
    $region8: #{tpu_custom_call.1} parent=1 // pred_region
      %s33 = ssub.s32 1024, 1024
      %34 = vsyncadd [#allocation6], %s33
      %s35 = sshll.u32 [#allocation5], 4
      %s36 = int_to_ptr.vmem [resolvable:$true] %s35
      %41 = dma.hbm_to_vmem [thread:$0]  %s1, 1024, %s36, [#allocation6], 64, 64, 4
    $region9: #{tpu_custom_call.1} parent=1 // pred_fallthru
      _
    // Predicated region
    $region10: #{tpu_custom_call.1} parent=1 // pred_check
      _
    $region11: #{tpu_custom_call.1} parent=1 // pred_check_branch
      %43 = sbr.rel (0) target = $region13
    $region12: #{tpu_custom_call.1} parent=1 // pred_region
      %s45 = ssub.s32 1024, 1024
      %46 = vsyncadd [#allocation6], %s45
      %s47 = sshll.u32 [#allocation7], 4
      %s48 = int_to_ptr.vmem [resolvable:$true] %s47
      %53 = dma.hbm_to_vmem [thread:$0]  %s2, 1024, %s48, [#allocation6], 64, 64, 4
    $region13: #{tpu_custom_call.1} parent=1 // pred_fallthru
      _
    // Predicated region
    $region14: #{tpu_custom_call.1} parent=1 // pred_check
      _
    $region15: #{tpu_custom_call.1} parent=1 // pred_check_branch
      %55 = sbr.rel (0) target = $region17
    $region16: #{tpu_custom_call.1} parent=1 // pred_region
      %s57 = ssub.s32 1024, 1024
      %58 = vsyncadd [#allocation9], %s57
      %s59 = sshll.u32 [#allocation8], 4
      %s60 = int_to_ptr.vmem [resolvable:$true] %s59
      %65 = dma.hbm_to_vmem [thread:$0]  %s3, 1024, %s60, [#allocation9], 64, 64, 4
    $region17: #{tpu_custom_call.1} parent=1 // pred_fallthru
      _
    // Predicated region
    $region18: #{tpu_custom_call.1} parent=1 // pred_check
      _
    $region19: #{tpu_custom_call.1} parent=1 // pred_check_branch
      %67 = sbr.rel (0) target = $region21
    $region20: #{tpu_custom_call.1} parent=1 // pred_region
      _
    $region21: #{tpu_custom_call.1} parent=1 // pred_fallthru
      _
    // Predicated region
    $region22: #{tpu_custom_call.1} parent=1 // pred_check
      _
    $region23: #{tpu_custom_call.1} parent=1 // pred_check_branch
      %69 = sbr.rel (0) target = $region25
    $region24: #{tpu_custom_call.1} parent=1 // pred_region
      %s71 = ssub.s32 1024, 1024
      %72 = vsyncadd [#allocation9], %s71
      %s73 = sshll.u32 [#allocation10], 4
      %s74 = int_to_ptr.vmem [resolvable:$true] %s73
      %79 = dma.hbm_to_vmem [thread:$0]  %s5, 1024, %s74, [#allocation9], 64, 64, 4
    $region25: #{tpu_custom_call.1} parent=1 // pred_fallthru
      _
    // Predicated region
    $region26: #{tpu_custom_call.1} parent=1 // pred_check
      _
    $region27: #{tpu_custom_call.1} parent=1 // pred_check_branch
      %81 = sbr.rel (0) target = $region29
    $region28: #{tpu_custom_call.1} parent=1 // pred_region
      %s83 = ssub.s32 1024, 1024
      %84 = vsyncadd [#allocation12], %s83
      %s85 = sshll.u32 [#allocation11], 4
      %s86 = int_to_ptr.vmem [resolvable:$true] %s85
      %91 = dma.hbm_to_vmem [thread:$0]  %s6, 1024, %s86, [#allocation12], 64, 64, 4
    $region29: #{tpu_custom_call.1} parent=1 // pred_fallthru
      _
    // Predicated region
    $region30: #{tpu_custom_call.1} parent=1 // pred_check
      _
    $region31: #{tpu_custom_call.1} parent=1 // pred_check_branch
      %93 = sbr.rel (0) target = $region33
    $region32: #{tpu_custom_call.1} parent=1 // pred_region
      _
    $region33: #{tpu_custom_call.1} parent=1 // pred_fallthru
      _
    // Predicated region
    $region34: #{tpu_custom_call.1} parent=1 // pred_check
      _
    $region35: #{tpu_custom_call.1} parent=1 // pred_check_branch
      %95 = sbr.rel (0) target = $region37
    $region36: #{tpu_custom_call.1} parent=1 // pred_region
      %96 = dma.done [#allocation3], 1024
    $region37: #{tpu_custom_call.1} parent=1 // pred_fallthru
      _
    // Predicated region
    $region38: #{tpu_custom_call.1} parent=1 // pred_check
      _
    $region39: #{tpu_custom_call.1} parent=1 // pred_check_branch
      %98 = sbr.rel (0) target = $region41
    $region40: #{tpu_custom_call.1} parent=1 // pred_region
      %99 = dma.done [#allocation6], 1024
    $region41: #{tpu_custom_call.1} parent=1 // pred_fallthru
      _
    // Predicated region
    $region42: #{tpu_custom_call.1} parent=1 // pred_check
      _
    $region43: #{tpu_custom_call.1} parent=1 // pred_check_branch
      %101 = sbr.rel (0) target = $region45
    $region44: #{tpu_custom_call.1} parent=1 // pred_region
      %102 = dma.done [#allocation6], 1024
    $region45: #{tpu_custom_call.1} parent=1 // pred_fallthru
      _
    // Predicated region
    $region46: #{tpu_custom_call.1} parent=1 // pred_check
      _
    $region47: #{tpu_custom_call.1} parent=1 // pred_check_branch
      %104 = sbr.rel (0) target = $region49
    $region48: #{tpu_custom_call.1} parent=1 // pred_region
      %105 = dma.done [#allocation9], 1024
    $region49: #{tpu_custom_call.1} parent=1 // pred_fallthru
      _
    // Predicated region
    $region50: #{tpu_custom_call.1} parent=1 // pred_check
      _
    $region51: #{tpu_custom_call.1} parent=1 // pred_check_branch
      %107 = sbr.rel (0) target = $region53
    $region52: #{tpu_custom_call.1} parent=1 // pred_region
      %108 = dma.done [#allocation9], 1024
    $region53: #{tpu_custom_call.1} parent=1 // pred_fallthru
      _
    // Predicated region
    $region54: #{tpu_custom_call.1} parent=1 // pred_check
      _
    $region55: #{tpu_custom_call.1} parent=1 // pred_check_branch
      %110 = sbr.rel (0) target = $region57
    $region56: #{tpu_custom_call.1} parent=1 // pred_region
      %111 = dma.done [#allocation12], 1024
    $region57: #{tpu_custom_call.1} parent=1 // pred_fallthru
      _
    %v113 = vld [vmem:[#allocation2] sm:$0xf]
    %v114 = vld [vmem:[#allocation2 + $0x4] sm:$0xf]
    %v115 = vld [vmem:[#allocation2 + $0x8] sm:$0xf]
    %v116 = vld [vmem:[#allocation2 + $0xc] sm:$0xf]
    %v117 = vld [vmem:[#allocation2 + $0x10] sm:$0xf]
    %v118 = vld [vmem:[#allocation2 + $0x14] sm:$0xf]
    %v119 = vld [vmem:[#allocation2 + $0x18] sm:$0xf]
    %v120 = vld [vmem:[#allocation2 + $0x1c] sm:$0xf]
    %v121 = vld [vmem:[#allocation2 + $0x20] sm:$0xf]
    %v122 = vld [vmem:[#allocation2 + $0x24] sm:$0xf]
    %v123 = vld [vmem:[#allocation2 + $0x28] sm:$0xf]
    %v124 = vld [vmem:[#allocation2 + $0x2c] sm:$0xf]
    %v125 = vld [vmem:[#allocation2 + $0x30] sm:$0xf]
    %v126 = vld [vmem:[#allocation2 + $0x34] sm:$0xf]
    %v127 = vld [vmem:[#allocation2 + $0x38] sm:$0xf]
    %v128 = vld [vmem:[#allocation2 + $0x3c] sm:$0xf]
    %v129 = vld [vmem:[#allocation5] sm:$0xf]
    %v130 = vld [vmem:[#allocation5 + $0x4] sm:$0xf]
    %v131 = vld [vmem:[#allocation5 + $0x8] sm:$0xf]
    %v132 = vld [vmem:[#allocation5 + $0xc] sm:$0xf]
    %v133 = vld [vmem:[#allocation5 + $0x10] sm:$0xf]
    %v134 = vld [vmem:[#allocation5 + $0x14] sm:$0xf]
    %v135 = vld [vmem:[#allocation5 + $0x18] sm:$0xf]
    %v136 = vld [vmem:[#allocation5 + $0x1c] sm:$0xf]
    %v137 = vld [vmem:[#allocation5 + $0x20] sm:$0xf]
    %v138 = vld [vmem:[#allocation5 + $0x24] sm:$0xf]
    %v139 = vld [vmem:[#allocation5 + $0x28] sm:$0xf]
    %v140 = vld [vmem:[#allocation5 + $0x2c] sm:$0xf]
    %v141 = vld [vmem:[#allocation5 + $0x30] sm:$0xf]
    %v142 = vld [vmem:[#allocation5 + $0x34] sm:$0xf]
    %v143 = vld [vmem:[#allocation5 + $0x38] sm:$0xf]
    %v144 = vld [vmem:[#allocation5 + $0x3c] sm:$0xf]
    %v161 = vunpack.c.l.b16 %v113
    %v162 = vunpack.c.l.b16 %v114
    %v163 = vunpack.c.l.b16 %v115
    %v164 = vunpack.c.l.b16 %v116
    %v165 = vunpack.c.l.b16 %v117
    %v166 = vunpack.c.l.b16 %v118
    %v167 = vunpack.c.l.b16 %v119
    %v168 = vunpack.c.l.b16 %v120
    %v169 = vunpack.c.l.b16 %v121
    %v170 = vunpack.c.l.b16 %v122
    %v171 = vunpack.c.l.b16 %v123
    %v172 = vunpack.c.l.b16 %v124
    %v173 = vunpack.c.l.b16 %v125
    %v174 = vunpack.c.l.b16 %v126
    %v175 = vunpack.c.l.b16 %v127
    %v176 = vunpack.c.l.b16 %v128
    %v177 = vpack.c.b16 %v162, %v161
    %v178 = vpack.c.b16 %v164, %v163
    %v179 = vpack.c.b16 %v166, %v165
    %v180 = vpack.c.b16 %v168, %v167
    %v181 = vpack.c.b16 %v170, %v169
    %v182 = vpack.c.b16 %v172, %v171
    %v183 = vpack.c.b16 %v174, %v173
    %v184 = vpack.c.b16 %v176, %v175
    %v209 = vunpack.c.l.b16 %v129
    %v210 = vunpack.c.l.b16 %v130
    %v211 = vunpack.c.l.b16 %v131
    %v212 = vunpack.c.l.b16 %v132
    %v213 = vunpack.c.l.b16 %v133
    %v214 = vunpack.c.l.b16 %v134
    %v215 = vunpack.c.l.b16 %v135
    %v216 = vunpack.c.l.b16 %v136
    %v217 = vunpack.c.l.b16 %v137
    %v218 = vunpack.c.l.b16 %v138
    %v219 = vunpack.c.l.b16 %v139
    %v220 = vunpack.c.l.b16 %v140
    %v221 = vunpack.c.l.b16 %v141
    %v222 = vunpack.c.l.b16 %v142
    %v223 = vunpack.c.l.b16 %v143
    %v224 = vunpack.c.l.b16 %v144
    %v225 = vpack.c.b16 %v210, %v209
    %v226 = vpack.c.b16 %v212, %v211
    %v227 = vpack.c.b16 %v214, %v213
    %v228 = vpack.c.b16 %v216, %v215
    %v229 = vpack.c.b16 %v218, %v217
    %v230 = vpack.c.b16 %v220, %v219
    %v231 = vpack.c.b16 %v222, %v221
    %v232 = vpack.c.b16 %v224, %v223
    %241 = vmatprep.subr.bf16.mxu0 0
    %242 = vmatpush1.bf16.msra.mxu0 %v225
    %243 = vmatprep.subr.bf16.mxu0 0
    %244 = vmatpush1.bf16.msra.mxu0 %v226
    %245 = vmatprep.subr.bf16.mxu0 0
    %246 = vmatpush1.bf16.msra.mxu0 %v227
    %247 = vmatprep.subr.bf16.mxu0 0
    %248 = vmatpush1.bf16.msra.mxu0 %v228
    %249 = vmatprep.subr.bf16.mxu0 0
    %250 = vmatpush1.bf16.msra.mxu0 %v229
    %251 = vmatprep.subr.bf16.mxu0 0
    %252 = vmatpush1.bf16.msra.mxu0 %v230
    %253 = vmatprep.subr.bf16.mxu0 0
    %254 = vmatpush1.bf16.msra.mxu0 %v231
    %255 = vmatprep.subr.bf16.mxu0 0
    %256 = vmatpush1.bf16.msra.mxu0 %v232
    %257 = vmatprep.subr.bf16.mxu0 0
    %258 = vmatpush1.bf16.msra.mxu0 0
    %259 = vmatprep.subr.bf16.mxu0 0
    %260 = vmatpush1.bf16.msra.mxu0 0
    %261 = vmatprep.subr.bf16.mxu0 0
    %262 = vmatpush1.bf16.msra.mxu0 0
    %263 = vmatprep.subr.bf16.mxu0 0
    %264 = vmatpush1.bf16.msra.mxu0 0
    %265 = vmatprep.subr.bf16.mxu0 0
    %266 = vmatpush1.bf16.msra.mxu0 0
    %267 = vmatprep.subr.bf16.mxu0 0
    %268 = vmatpush1.bf16.msra.mxu0 0
    %269 = vmatprep.subr.bf16.mxu0 0
    %270 = vmatpush1.bf16.msra.mxu0 0
    %271 = vmatprep.subr.bf16.mxu0 0
    %272 = vmatpush1.bf16.msra.mxu0 0
    %273 = vmatprep.mubr.bf16.mxu0 0
    %274 = vmatmul.mubr.bf16.gmra.mrb[0].mxu0 %v177
    %v275 = vpop.f32.mrb[0].mxu0
    %v276 = vadd.f32 0.0, %v275
    %v277 = vpop.f32.mrb[0].mxu0
    %v278 = vpop.f32.mrb[0].mxu0
    %v279 = vadd.f32 0.0, %v278
    %v280 = vpop.f32.mrb[0].mxu0
    %281 = vmatprep.mubr.bf16.mxu0 0
    %282 = vmatmul.mubr.bf16.gmra.mrb[0].mxu0 %v178
    %v283 = vpop.f32.mrb[0].mxu0
    %v284 = vadd.f32 0.0, %v283
    %v285 = vpop.f32.mrb[0].mxu0
    %v286 = vpop.f32.mrb[0].mxu0
    %v287 = vadd.f32 0.0, %v286
    %v288 = vpop.f32.mrb[0].mxu0
    %289 = vmatprep.mubr.bf16.mxu0 0
    %290 = vmatmul.mubr.bf16.gmra.mrb[0].mxu0 %v179
    %v291 = vpop.f32.mrb[0].mxu0
    %v292 = vadd.f32 0.0, %v291
    %v293 = vpop.f32.mrb[0].mxu0
    %v294 = vpop.f32.mrb[0].mxu0
    %v295 = vadd.f32 0.0, %v294
    %v296 = vpop.f32.mrb[0].mxu0
    %297 = vmatprep.mubr.bf16.mxu0 0
    %298 = vmatmul.mubr.bf16.gmra.mrb[0].mxu0 %v180
    %v299 = vpop.f32.mrb[0].mxu0
    %v300 = vadd.f32 0.0, %v299
    %v301 = vpop.f32.mrb[0].mxu0
    %v302 = vpop.f32.mrb[0].mxu0
    %v303 = vadd.f32 0.0, %v302
    %v304 = vpop.f32.mrb[0].mxu0
    %305 = vmatprep.mubr.bf16.mxu0 0
    %306 = vmatmul.mubr.bf16.gmra.mrb[0].mxu0 %v181
    %v307 = vpop.f32.mrb[0].mxu0
    %v308 = vadd.f32 0.0, %v307
    %v309 = vpop.f32.mrb[0].mxu0
    %v310 = vpop.f32.mrb[0].mxu0
    %v311 = vadd.f32 0.0, %v310
    %v312 = vpop.f32.mrb[0].mxu0
    %313 = vmatprep.mubr.bf16.mxu0 0
    %314 = vmatmul.mubr.bf16.gmra.mrb[0].mxu0 %v182
    %v315 = vpop.f32.mrb[0].mxu0
    %v316 = vadd.f32 0.0, %v315
    %v317 = vpop.f32.mrb[0].mxu0
    %v318 = vpop.f32.mrb[0].mxu0
    %v319 = vadd.f32 0.0, %v318
    %v320 = vpop.f32.mrb[0].mxu0
    %321 = vmatprep.mubr.bf16.mxu0 0
    %322 = vmatmul.mubr.bf16.gmra.mrb[0].mxu0 %v183
    %v323 = vpop.f32.mrb[0].mxu0
    %v324 = vadd.f32 0.0, %v323
    %v325 = vpop.f32.mrb[0].mxu0
    %v326 = vpop.f32.mrb[0].mxu0
    %v327 = vadd.f32 0.0, %v326
    %v328 = vpop.f32.mrb[0].mxu0
    %329 = vmatprep.mubr.bf16.mxu0 0
    %330 = vmatmul.mubr.bf16.gmra.mrb[0].mxu0 %v184
    %v331 = vpop.f32.mrb[0].mxu0
    %v332 = vadd.f32 0.0, %v331
    %v333 = vpop.f32.mrb[0].mxu0
    %v334 = vpop.f32.mrb[0].mxu0
    %v335 = vadd.f32 0.0, %v334
    %v336 = vpop.f32.mrb[0].mxu0
    %337 = vdwg.mxu0
    %v338 = vpack.c.bf16 %v279, %v276
    %v339 = vpack.c.bf16 %v287, %v284
    %v340 = vpack.c.bf16 %v295, %v292
    %v341 = vpack.c.bf16 %v303, %v300
    %v342 = vpack.c.bf16 %v311, %v308
    %v343 = vpack.c.bf16 %v319, %v316
    %v344 = vpack.c.bf16 %v327, %v324
    %v345 = vpack.c.bf16 %v335, %v332
    %v346 = vld [vmem:[#allocation7] sm:$0xf]
    %v347 = vld [vmem:[#allocation7 + $0x4] sm:$0xf]
    %v348 = vld [vmem:[#allocation7 + $0x8] sm:$0xf]
    %v349 = vld [vmem:[#allocation7 + $0xc] sm:$0xf]
    %v350 = vld [vmem:[#allocation7 + $0x10] sm:$0xf]
    %v351 = vld [vmem:[#allocation7 + $0x14] sm:$0xf]
    %v352 = vld [vmem:[#allocation7 + $0x18] sm:$0xf]
    %v353 = vld [vmem:[#allocation7 + $0x1c] sm:$0xf]
    %v354 = vld [vmem:[#allocation7 + $0x20] sm:$0xf]
    %v355 = vld [vmem:[#allocation7 + $0x24] sm:$0xf]
    %v356 = vld [vmem:[#allocation7 + $0x28] sm:$0xf]
    %v357 = vld [vmem:[#allocation7 + $0x2c] sm:$0xf]
    %v358 = vld [vmem:[#allocation7 + $0x30] sm:$0xf]
    %v359 = vld [vmem:[#allocation7 + $0x34] sm:$0xf]
    %v360 = vld [vmem:[#allocation7 + $0x38] sm:$0xf]
    %v361 = vld [vmem:[#allocation7 + $0x3c] sm:$0xf]
    %v362 = vld [vmem:[#allocation8] sm:$0xf]
    %v363 = vld [vmem:[#allocation8 + $0x4] sm:$0xf]
    %v364 = vld [vmem:[#allocation8 + $0x8] sm:$0xf]
    %v365 = vld [vmem:[#allocation8 + $0xc] sm:$0xf]
    %v366 = vld [vmem:[#allocation8 + $0x10] sm:$0xf]
    %v367 = vld [vmem:[#allocation8 + $0x14] sm:$0xf]
    %v368 = vld [vmem:[#allocation8 + $0x18] sm:$0xf]
    %v369 = vld [vmem:[#allocation8 + $0x1c] sm:$0xf]
    %v370 = vld [vmem:[#allocation8 + $0x20] sm:$0xf]
    %v371 = vld [vmem:[#allocation8 + $0x24] sm:$0xf]
    %v372 = vld [vmem:[#allocation8 + $0x28] sm:$0xf]
    %v373 = vld [vmem:[#allocation8 + $0x2c] sm:$0xf]
    %v374 = vld [vmem:[#allocation8 + $0x30] sm:$0xf]
    %v375 = vld [vmem:[#allocation8 + $0x34] sm:$0xf]
    %v376 = vld [vmem:[#allocation8 + $0x38] sm:$0xf]
    %v377 = vld [vmem:[#allocation8 + $0x3c] sm:$0xf]
    %v394 = vunpack.c.l.b16 %v362
    %v395 = vunpack.c.l.b16 %v363
    %v396 = vunpack.c.l.b16 %v364
    %v397 = vunpack.c.l.b16 %v365
    %v398 = vunpack.c.l.b16 %v366
    %v399 = vunpack.c.l.b16 %v367
    %v400 = vunpack.c.l.b16 %v368
    %v401 = vunpack.c.l.b16 %v369
    %v402 = vunpack.c.l.b16 %v370
    %v403 = vunpack.c.l.b16 %v371
    %v404 = vunpack.c.l.b16 %v372
    %v405 = vunpack.c.l.b16 %v373
    %v406 = vunpack.c.l.b16 %v374
    %v407 = vunpack.c.l.b16 %v375
    %v408 = vunpack.c.l.b16 %v376
    %v409 = vunpack.c.l.b16 %v377
    %v410 = vpack.c.b16 %v395, %v394
    %v411 = vpack.c.b16 %v397, %v396
    %v412 = vpack.c.b16 %v399, %v398
    %v413 = vpack.c.b16 %v401, %v400
    %v414 = vpack.c.b16 %v403, %v402
    %v415 = vpack.c.b16 %v405, %v404
    %v416 = vpack.c.b16 %v407, %v406
    %v417 = vpack.c.b16 %v409, %v408
    %426 = vmatprep.subr.bf16.mxu0 0
    %427 = vmatpush1.bf16.msra.mxu0 %v410
    %428 = vmatprep.subr.bf16.mxu0 0
    %429 = vmatpush1.bf16.msra.mxu0 %v411
    %430 = vmatprep.subr.bf16.mxu0 0
    %431 = vmatpush1.bf16.msra.mxu0 %v412
    %432 = vmatprep.subr.bf16.mxu0 0
    %433 = vmatpush1.bf16.msra.mxu0 %v413
    %434 = vmatprep.subr.bf16.mxu0 0
    %435 = vmatpush1.bf16.msra.mxu0 %v414
    %436 = vmatprep.subr.bf16.mxu0 0
    %437 = vmatpush1.bf16.msra.mxu0 %v415
    %438 = vmatprep.subr.bf16.mxu0 0
    %439 = vmatpush1.bf16.msra.mxu0 %v416
    %440 = vmatprep.subr.bf16.mxu0 0
    %441 = vmatpush1.bf16.msra.mxu0 %v417
    %442 = vmatprep.subr.bf16.mxu0 0
    %443 = vmatpush1.bf16.msra.mxu0 0
    %444 = vmatprep.subr.bf16.mxu0 0
    %445 = vmatpush1.bf16.msra.mxu0 0
    %446 = vmatprep.subr.bf16.mxu0 0
    %447 = vmatpush1.bf16.msra.mxu0 0
    %448 = vmatprep.subr.bf16.mxu0 0
    %449 = vmatpush1.bf16.msra.mxu0 0
    %450 = vmatprep.subr.bf16.mxu0 0
    %451 = vmatpush1.bf16.msra.mxu0 0
    %452 = vmatprep.subr.bf16.mxu0 0
    %453 = vmatpush1.bf16.msra.mxu0 0
    %454 = vmatprep.subr.bf16.mxu0 0
    %455 = vmatpush1.bf16.msra.mxu0 0
    %456 = vmatprep.subr.bf16.mxu0 0
    %457 = vmatpush1.bf16.msra.mxu0 0
    %458 = vmatprep.mubr.bf16.mxu0 0
    %459 = vmatmul.mubr.bf16.gmra.mrb[0].mxu0 %v225
    %v460 = vpop.f32.mrb[0].mxu0
    %v461 = vadd.f32 0.0, %v460
    %v462 = vpop.f32.mrb[0].mxu0
    %v463 = vpop.f32.mrb[0].mxu0
    %v464 = vadd.f32 0.0, %v463
    %v465 = vpop.f32.mrb[0].mxu0
    %466 = vmatprep.mubr.bf16.mxu0 0
    %467 = vmatmul.mubr.bf16.gmra.mrb[0].mxu0 %v226
    %v468 = vpop.f32.mrb[0].mxu0
    %v469 = vadd.f32 0.0, %v468
    %v470 = vpop.f32.mrb[0].mxu0
    %v471 = vpop.f32.mrb[0].mxu0
    %v472 = vadd.f32 0.0, %v471
    %v473 = vpop.f32.mrb[0].mxu0
    %474 = vmatprep.mubr.bf16.mxu0 0
    %475 = vmatmul.mubr.bf16.gmra.mrb[0].mxu0 %v227
    %v476 = vpop.f32.mrb[0].mxu0
    %v477 = vadd.f32 0.0, %v476
    %v478 = vpop.f32.mrb[0].mxu0
    %v479 = vpop.f32.mrb[0].mxu0
    %v480 = vadd.f32 0.0, %v479
    %v481 = vpop.f32.mrb[0].mxu0
    %482 = vmatprep.mubr.bf16.mxu0 0
    %483 = vmatmul.mubr.bf16.gmra.mrb[0].mxu0 %v228
    %v484 = vpop.f32.mrb[0].mxu0
    %v485 = vadd.f32 0.0, %v484
    %v486 = vpop.f32.mrb[0].mxu0
    %v487 = vpop.f32.mrb[0].mxu0
    %v488 = vadd.f32 0.0, %v487
    %v489 = vpop.f32.mrb[0].mxu0
    %490 = vmatprep.mubr.bf16.mxu0 0
    %491 = vmatmul.mubr.bf16.gmra.mrb[0].mxu0 %v229
    %v492 = vpop.f32.mrb[0].mxu0
    %v493 = vadd.f32 0.0, %v492
    %v494 = vpop.f32.mrb[0].mxu0
    %v495 = vpop.f32.mrb[0].mxu0
    %v496 = vadd.f32 0.0, %v495
    %v497 = vpop.f32.mrb[0].mxu0
    %498 = vmatprep.mubr.bf16.mxu0 0
    %499 = vmatmul.mubr.bf16.gmra.mrb[0].mxu0 %v230
    %v500 = vpop.f32.mrb[0].mxu0
    %v501 = vadd.f32 0.0, %v500
    %v502 = vpop.f32.mrb[0].mxu0
    %v503 = vpop.f32.mrb[0].mxu0
    %v504 = vadd.f32 0.0, %v503
    %v505 = vpop.f32.mrb[0].mxu0
    %506 = vmatprep.mubr.bf16.mxu0 0
    %507 = vmatmul.mubr.bf16.gmra.mrb[0].mxu0 %v231
    %v508 = vpop.f32.mrb[0].mxu0
    %v509 = vadd.f32 0.0, %v508
    %v510 = vpop.f32.mrb[0].mxu0
    %v511 = vpop.f32.mrb[0].mxu0
    %v512 = vadd.f32 0.0, %v511
    %v513 = vpop.f32.mrb[0].mxu0
    %514 = vmatprep.mubr.bf16.mxu0 0
    %515 = vmatmul.mubr.bf16.gmra.mrb[0].mxu0 %v232
    %v516 = vpop.f32.mrb[0].mxu0
    %v517 = vadd.f32 0.0, %v516
    %v518 = vpop.f32.mrb[0].mxu0
    %v519 = vpop.f32.mrb[0].mxu0
    %v520 = vadd.f32 0.0, %v519
    %v521 = vpop.f32.mrb[0].mxu0
    %522 = vdwg.mxu0
    %v539 = vunpack.c.l.b16 %v346
    %v540 = vunpack.c.l.b16 %v347
    %v541 = vunpack.c.l.b16 %v348
    %v542 = vunpack.c.l.b16 %v349
    %v543 = vunpack.c.l.b16 %v350
    %v544 = vunpack.c.l.b16 %v351
    %v545 = vunpack.c.l.b16 %v352
    %v546 = vunpack.c.l.b16 %v353
    %v547 = vunpack.c.l.b16 %v354
    %v548 = vunpack.c.l.b16 %v355
    %v549 = vunpack.c.l.b16 %v356
    %v550 = vunpack.c.l.b16 %v357
    %v551 = vunpack.c.l.b16 %v358
    %v552 = vunpack.c.l.b16 %v359
    %v553 = vunpack.c.l.b16 %v360
    %v554 = vunpack.c.l.b16 %v361
    %v555 = vpack.c.b16 %v540, %v539
    %v556 = vpack.c.b16 %v542, %v541
    %v557 = vpack.c.b16 %v544, %v543
    %v558 = vpack.c.b16 %v546, %v545
    %v559 = vpack.c.b16 %v548, %v547
    %v560 = vpack.c.b16 %v550, %v549
    %v561 = vpack.c.b16 %v552, %v551
    %v562 = vpack.c.b16 %v554, %v553
    %571 = vmatprep.subr.bf16.mxu0 0
    %572 = vmatpush1.bf16.msra.mxu0 %v555
    %573 = vmatprep.subr.bf16.mxu0 0
    %574 = vmatpush1.bf16.msra.mxu0 %v556
    %575 = vmatprep.subr.bf16.mxu0 0
    %576 = vmatpush1.bf16.msra.mxu0 %v557
    %577 = vmatprep.subr.bf16.mxu0 0
    %578 = vmatpush1.bf16.msra.mxu0 %v558
    %579 = vmatprep.subr.bf16.mxu0 0
    %580 = vmatpush1.bf16.msra.mxu0 %v559
    %581 = vmatprep.subr.bf16.mxu0 0
    %582 = vmatpush1.bf16.msra.mxu0 %v560
    %583 = vmatprep.subr.bf16.mxu0 0
    %584 = vmatpush1.bf16.msra.mxu0 %v561
    %585 = vmatprep.subr.bf16.mxu0 0
    %586 = vmatpush1.bf16.msra.mxu0 %v562
    %587 = vmatprep.subr.bf16.mxu0 0
    %588 = vmatpush1.bf16.msra.mxu0 0
    %589 = vmatprep.subr.bf16.mxu0 0
    %590 = vmatpush1.bf16.msra.mxu0 0
    %591 = vmatprep.subr.bf16.mxu0 0
    %592 = vmatpush1.bf16.msra.mxu0 0
    %593 = vmatprep.subr.bf16.mxu0 0
    %594 = vmatpush1.bf16.msra.mxu0 0
    %595 = vmatprep.subr.bf16.mxu0 0
    %596 = vmatpush1.bf16.msra.mxu0 0
    %597 = vmatprep.subr.bf16.mxu0 0
    %598 = vmatpush1.bf16.msra.mxu0 0
    %599 = vmatprep.subr.bf16.mxu0 0
    %600 = vmatpush1.bf16.msra.mxu0 0
    %601 = vmatprep.subr.bf16.mxu0 0
    %602 = vmatpush1.bf16.msra.mxu0 0
    %603 = vmatprep.mubr.bf16.mxu0 0
    %604 = vmatmul.mubr.bf16.gmra.mrb[0].mxu0 %v338
    %v605 = vpop.f32.mrb[0].mxu0
    %v606 = vadd.f32 %v461, %v605
    %v607 = vpop.f32.mrb[0].mxu0
    %v608 = vpop.f32.mrb[0].mxu0
    %v609 = vadd.f32 %v464, %v608
    %v610 = vpop.f32.mrb[0].mxu0
    %611 = vmatprep.mubr.bf16.mxu0 0
    %612 = vmatmul.mubr.bf16.gmra.mrb[0].mxu0 %v339
    %v613 = vpop.f32.mrb[0].mxu0
    %v614 = vadd.f32 %v469, %v613
    %v615 = vpop.f32.mrb[0].mxu0
    %v616 = vpop.f32.mrb[0].mxu0
    %v617 = vadd.f32 %v472, %v616
    %v618 = vpop.f32.mrb[0].mxu0
    %619 = vmatprep.mubr.bf16.mxu0 0
    %620 = vmatmul.mubr.bf16.gmra.mrb[0].mxu0 %v340
    %v621 = vpop.f32.mrb[0].mxu0
    %v622 = vadd.f32 %v477, %v621
    %v623 = vpop.f32.mrb[0].mxu0
    %v624 = vpop.f32.mrb[0].mxu0
    %v625 = vadd.f32 %v480, %v624
    %v626 = vpop.f32.mrb[0].mxu0
    %627 = vmatprep.mubr.bf16.mxu0 0
    %628 = vmatmul.mubr.bf16.gmra.mrb[0].mxu0 %v341
    %v629 = vpop.f32.mrb[0].mxu0
    %v630 = vadd.f32 %v485, %v629
    %v631 = vpop.f32.mrb[0].mxu0
    %v632 = vpop.f32.mrb[0].mxu0
    %v633 = vadd.f32 %v488, %v632
    %v634 = vpop.f32.mrb[0].mxu0
    %635 = vmatprep.mubr.bf16.mxu0 0
    %636 = vmatmul.mubr.bf16.gmra.mrb[0].mxu0 %v342
    %v637 = vpop.f32.mrb[0].mxu0
    %v638 = vadd.f32 %v493, %v637
    %v639 = vpop.f32.mrb[0].mxu0
    %v640 = vpop.f32.mrb[0].mxu0
    %v641 = vadd.f32 %v496, %v640
    %v642 = vpop.f32.mrb[0].mxu0
    %643 = vmatprep.mubr.bf16.mxu0 0
    %644 = vmatmul.mubr.bf16.gmra.mrb[0].mxu0 %v343
    %v645 = vpop.f32.mrb[0].mxu0
    %v646 = vadd.f32 %v501, %v645
    %v647 = vpop.f32.mrb[0].mxu0
    %v648 = vpop.f32.mrb[0].mxu0
    %v649 = vadd.f32 %v504, %v648
    %v650 = vpop.f32.mrb[0].mxu0
    %651 = vmatprep.mubr.bf16.mxu0 0
    %652 = vmatmul.mubr.bf16.gmra.mrb[0].mxu0 %v344
    %v653 = vpop.f32.mrb[0].mxu0
    %v654 = vadd.f32 %v509, %v653
    %v655 = vpop.f32.mrb[0].mxu0
    %v656 = vpop.f32.mrb[0].mxu0
    %v657 = vadd.f32 %v512, %v656
    %v658 = vpop.f32.mrb[0].mxu0
    %659 = vmatprep.mubr.bf16.mxu0 0
    %660 = vmatmul.mubr.bf16.gmra.mrb[0].mxu0 %v345
    %v661 = vpop.f32.mrb[0].mxu0
    %v662 = vadd.f32 %v517, %v661
    %v663 = vpop.f32.mrb[0].mxu0
    %v664 = vpop.f32.mrb[0].mxu0
    %v665 = vadd.f32 %v520, %v664
    %v666 = vpop.f32.mrb[0].mxu0
    %667 = vdwg.mxu0
    %v668 = vld [vmem:[%s4] sm:$0x1]
    %v670 = vlaneseq
    %v671 = vshrl.u32 %v670, 7
    %v672 = vsub.s32 0, %v671
    %v673 = vrot.slane %v668, %v672
    %v675 = vadd.f32 %v606, %v673
    %v676 = vadd.f32 %v609, %v673
    %v677 = vadd.f32 %v614, %v673
    %v678 = vadd.f32 %v617, %v673
    %v679 = vadd.f32 %v622, %v673
    %v680 = vadd.f32 %v625, %v673
    %v681 = vadd.f32 %v630, %v673
    %v682 = vadd.f32 %v633, %v673
    %v683 = vadd.f32 %v638, %v673
    %v684 = vadd.f32 %v641, %v673
    %v685 = vadd.f32 %v646, %v673
    %v686 = vadd.f32 %v649, %v673
    %v687 = vadd.f32 %v654, %v673
    %v688 = vadd.f32 %v657, %v673
    %v689 = vadd.f32 %v662, %v673
    %v690 = vadd.f32 %v665, %v673
    %v691 = vmax.f32 %v675, 0.0
    %v692 = vmax.f32 %v676, 0.0
    %v693 = vmax.f32 %v677, 0.0
    %v694 = vmax.f32 %v678, 0.0
    %v695 = vmax.f32 %v679, 0.0
    %v696 = vmax.f32 %v680, 0.0
    %v697 = vmax.f32 %v681, 0.0
    %v698 = vmax.f32 %v682, 0.0
    %v699 = vmax.f32 %v683, 0.0
    %v700 = vmax.f32 %v684, 0.0
    %v701 = vmax.f32 %v685, 0.0
    %v702 = vmax.f32 %v686, 0.0
    %v703 = vmax.f32 %v687, 0.0
    %v704 = vmax.f32 %v688, 0.0
    %v705 = vmax.f32 %v689, 0.0
    %v706 = vmax.f32 %v690, 0.0
    %v707 = vpack.c.bf16 %v692, %v691
    %v708 = vpack.c.bf16 %v694, %v693
    %v709 = vpack.c.bf16 %v696, %v695
    %v710 = vpack.c.bf16 %v698, %v697
    %v711 = vpack.c.bf16 %v700, %v699
    %v712 = vpack.c.bf16 %v702, %v701
    %v713 = vpack.c.bf16 %v704, %v703
    %v714 = vpack.c.bf16 %v706, %v705
    %715 = vmatprep.subr.bf16.mxu0 0
    %716 = vmatpush1.bf16.msra.mxu0 %v707
    %717 = vmatprep.subr.bf16.mxu0 0
    %718 = vmatpush1.bf16.msra.mxu0 %v708
    %719 = vmatprep.subr.bf16.mxu0 0
    %720 = vmatpush1.bf16.msra.mxu0 %v709
    %721 = vmatprep.subr.bf16.mxu0 0
    %722 = vmatpush1.bf16.msra.mxu0 %v710
    %723 = vmatprep.subr.bf16.mxu0 0
    %724 = vmatpush1.bf16.msra.mxu0 %v711
    %725 = vmatprep.subr.bf16.mxu0 0
    %726 = vmatpush1.bf16.msra.mxu0 %v712
    %727 = vmatprep.subr.bf16.mxu0 0
    %728 = vmatpush1.bf16.msra.mxu0 %v713
    %729 = vmatprep.subr.bf16.mxu0 0
    %730 = vmatpush1.bf16.msra.mxu0 %v714
    %731 = vmatprep.subr.bf16.mxu0 0
    %732 = vmatpush1.bf16.msra.mxu0 0
    %733 = vmatprep.subr.bf16.mxu0 0
    %734 = vmatpush1.bf16.msra.mxu0 0
    %735 = vmatprep.subr.bf16.mxu0 0
    %736 = vmatpush1.bf16.msra.mxu0 0
    %737 = vmatprep.subr.bf16.mxu0 0
    %738 = vmatpush1.bf16.msra.mxu0 0
    %739 = vmatprep.subr.bf16.mxu0 0
    %740 = vmatpush1.bf16.msra.mxu0 0
    %741 = vmatprep.subr.bf16.mxu0 0
    %742 = vmatpush1.bf16.msra.mxu0 0
    %743 = vmatprep.subr.bf16.mxu0 0
    %744 = vmatpush1.bf16.msra.mxu0 0
    %745 = vmatprep.subr.bf16.mxu0 0
    %746 = vmatpush1.bf16.msra.mxu0 0
    %747 = vmatprep.mubr.bf16.mxu0 0
    %748 = vmatmul.mubr.bf16.gmra.mrb[0].mxu0 %v177
    %v749 = vpop.f32.mrb[0].mxu0
    %v750 = vadd.f32 0.0, %v749
    %v751 = vpop.f32.mrb[0].mxu0
    %v752 = vpop.f32.mrb[0].mxu0
    %v753 = vadd.f32 0.0, %v752
    %v754 = vpop.f32.mrb[0].mxu0
    %755 = vmatprep.mubr.bf16.mxu0 0
    %756 = vmatmul.mubr.bf16.gmra.mrb[0].mxu0 %v178
    %v757 = vpop.f32.mrb[0].mxu0
    %v758 = vadd.f32 0.0, %v757
    %v759 = vpop.f32.mrb[0].mxu0
    %v760 = vpop.f32.mrb[0].mxu0
    %v761 = vadd.f32 0.0, %v760
    %v762 = vpop.f32.mrb[0].mxu0
    %763 = vmatprep.mubr.bf16.mxu0 0
    %764 = vmatmul.mubr.bf16.gmra.mrb[0].mxu0 %v179
    %v765 = vpop.f32.mrb[0].mxu0
    %v766 = vadd.f32 0.0, %v765
    %v767 = vpop.f32.mrb[0].mxu0
    %v768 = vpop.f32.mrb[0].mxu0
    %v769 = vadd.f32 0.0, %v768
    %v770 = vpop.f32.mrb[0].mxu0
    %771 = vmatprep.mubr.bf16.mxu0 0
    %772 = vmatmul.mubr.bf16.gmra.mrb[0].mxu0 %v180
    %v773 = vpop.f32.mrb[0].mxu0
    %v774 = vadd.f32 0.0, %v773
    %v775 = vpop.f32.mrb[0].mxu0
    %v776 = vpop.f32.mrb[0].mxu0
    %v777 = vadd.f32 0.0, %v776
    %v778 = vpop.f32.mrb[0].mxu0
    %779 = vmatprep.mubr.bf16.mxu0 0
    %780 = vmatmul.mubr.bf16.gmra.mrb[0].mxu0 %v181
    %v781 = vpop.f32.mrb[0].mxu0
    %v782 = vadd.f32 0.0, %v781
    %v783 = vpop.f32.mrb[0].mxu0
    %v784 = vpop.f32.mrb[0].mxu0
    %v785 = vadd.f32 0.0, %v784
    %v786 = vpop.f32.mrb[0].mxu0
    %787 = vmatprep.mubr.bf16.mxu0 0
    %788 = vmatmul.mubr.bf16.gmra.mrb[0].mxu0 %v182
    %v789 = vpop.f32.mrb[0].mxu0
    %v790 = vadd.f32 0.0, %v789
    %v791 = vpop.f32.mrb[0].mxu0
    %v792 = vpop.f32.mrb[0].mxu0
    %v793 = vadd.f32 0.0, %v792
    %v794 = vpop.f32.mrb[0].mxu0
    %795 = vmatprep.mubr.bf16.mxu0 0
    %796 = vmatmul.mubr.bf16.gmra.mrb[0].mxu0 %v183
    %v797 = vpop.f32.mrb[0].mxu0
    %v798 = vadd.f32 0.0, %v797
    %v799 = vpop.f32.mrb[0].mxu0
    %v800 = vpop.f32.mrb[0].mxu0
    %v801 = vadd.f32 0.0, %v800
    %v802 = vpop.f32.mrb[0].mxu0
    %803 = vmatprep.mubr.bf16.mxu0 0
    %804 = vmatmul.mubr.bf16.gmra.mrb[0].mxu0 %v184
    %v805 = vpop.f32.mrb[0].mxu0
    %v806 = vadd.f32 0.0, %v805
    %v807 = vpop.f32.mrb[0].mxu0
    %v808 = vpop.f32.mrb[0].mxu0
    %v809 = vadd.f32 0.0, %v808
    %v810 = vpop.f32.mrb[0].mxu0
    %811 = vdwg.mxu0
    %v812 = vpack.c.bf16 %v753, %v750
    %v813 = vpack.c.bf16 %v761, %v758
    %v814 = vpack.c.bf16 %v769, %v766
    %v815 = vpack.c.bf16 %v777, %v774
    %v816 = vpack.c.bf16 %v785, %v782
    %v817 = vpack.c.bf16 %v793, %v790
    %v818 = vpack.c.bf16 %v801, %v798
    %v819 = vpack.c.bf16 %v809, %v806
    %v820 = vld [vmem:[#allocation10] sm:$0xf]
    %v821 = vld [vmem:[#allocation10 + $0x4] sm:$0xf]
    %v822 = vld [vmem:[#allocation10 + $0x8] sm:$0xf]
    %v823 = vld [vmem:[#allocation10 + $0xc] sm:$0xf]
    %v824 = vld [vmem:[#allocation10 + $0x10] sm:$0xf]
    %v825 = vld [vmem:[#allocation10 + $0x14] sm:$0xf]
    %v826 = vld [vmem:[#allocation10 + $0x18] sm:$0xf]
    %v827 = vld [vmem:[#allocation10 + $0x1c] sm:$0xf]
    %v828 = vld [vmem:[#allocation10 + $0x20] sm:$0xf]
    %v829 = vld [vmem:[#allocation10 + $0x24] sm:$0xf]
    %v830 = vld [vmem:[#allocation10 + $0x28] sm:$0xf]
    %v831 = vld [vmem:[#allocation10 + $0x2c] sm:$0xf]
    %v832 = vld [vmem:[#allocation10 + $0x30] sm:$0xf]
    %v833 = vld [vmem:[#allocation10 + $0x34] sm:$0xf]
    %v834 = vld [vmem:[#allocation10 + $0x38] sm:$0xf]
    %v835 = vld [vmem:[#allocation10 + $0x3c] sm:$0xf]
    %v836 = vld [vmem:[#allocation11] sm:$0xf]
    %v837 = vld [vmem:[#allocation11 + $0x4] sm:$0xf]
    %v838 = vld [vmem:[#allocation11 + $0x8] sm:$0xf]
    %v839 = vld [vmem:[#allocation11 + $0xc] sm:$0xf]
    %v840 = vld [vmem:[#allocation11 + $0x10] sm:$0xf]
    %v841 = vld [vmem:[#allocation11 + $0x14] sm:$0xf]
    %v842 = vld [vmem:[#allocation11 + $0x18] sm:$0xf]
    %v843 = vld [vmem:[#allocation11 + $0x1c] sm:$0xf]
    %v844 = vld [vmem:[#allocation11 + $0x20] sm:$0xf]
    %v845 = vld [vmem:[#allocation11 + $0x24] sm:$0xf]
    %v846 = vld [vmem:[#allocation11 + $0x28] sm:$0xf]
    %v847 = vld [vmem:[#allocation11 + $0x2c] sm:$0xf]
    %v848 = vld [vmem:[#allocation11 + $0x30] sm:$0xf]
    %v849 = vld [vmem:[#allocation11 + $0x34] sm:$0xf]
    %v850 = vld [vmem:[#allocation11 + $0x38] sm:$0xf]
    %v851 = vld [vmem:[#allocation11 + $0x3c] sm:$0xf]
    %v868 = vunpack.c.l.b16 %v836
    %v869 = vunpack.c.l.b16 %v837
    %v870 = vunpack.c.l.b16 %v838
    %v871 = vunpack.c.l.b16 %v839
    %v872 = vunpack.c.l.b16 %v840
    %v873 = vunpack.c.l.b16 %v841
    %v874 = vunpack.c.l.b16 %v842
    %v875 = vunpack.c.l.b16 %v843
    %v876 = vunpack.c.l.b16 %v844
    %v877 = vunpack.c.l.b16 %v845
    %v878 = vunpack.c.l.b16 %v846
    %v879 = vunpack.c.l.b16 %v847
    %v880 = vunpack.c.l.b16 %v848
    %v881 = vunpack.c.l.b16 %v849
    %v882 = vunpack.c.l.b16 %v850
    %v883 = vunpack.c.l.b16 %v851
    %v884 = vpack.c.b16 %v869, %v868
    %v885 = vpack.c.b16 %v871, %v870
    %v886 = vpack.c.b16 %v873, %v872
    %v887 = vpack.c.b16 %v875, %v874
    %v888 = vpack.c.b16 %v877, %v876
    %v889 = vpack.c.b16 %v879, %v878
    %v890 = vpack.c.b16 %v881, %v880
    %v891 = vpack.c.b16 %v883, %v882
    %900 = vmatprep.subr.bf16.mxu0 0
    %901 = vmatpush1.bf16.msra.mxu0 %v884
    %902 = vmatprep.subr.bf16.mxu0 0
    %903 = vmatpush1.bf16.msra.mxu0 %v885
    %904 = vmatprep.subr.bf16.mxu0 0
    %905 = vmatpush1.bf16.msra.mxu0 %v886
    %906 = vmatprep.subr.bf16.mxu0 0
    %907 = vmatpush1.bf16.msra.mxu0 %v887
    %908 = vmatprep.subr.bf16.mxu0 0
    %909 = vmatpush1.bf16.msra.mxu0 %v888
    %910 = vmatprep.subr.bf16.mxu0 0
    %911 = vmatpush1.bf16.msra.mxu0 %v889
    %912 = vmatprep.subr.bf16.mxu0 0
    %913 = vmatpush1.bf16.msra.mxu0 %v890
    %914 = vmatprep.subr.bf16.mxu0 0
    %915 = vmatpush1.bf16.msra.mxu0 %v891
    %916 = vmatprep.subr.bf16.mxu0 0
    %917 = vmatpush1.bf16.msra.mxu0 0
    %918 = vmatprep.subr.bf16.mxu0 0
    %919 = vmatpush1.bf16.msra.mxu0 0
    %920 = vmatprep.subr.bf16.mxu0 0
    %921 = vmatpush1.bf16.msra.mxu0 0
    %922 = vmatprep.subr.bf16.mxu0 0
    %923 = vmatpush1.bf16.msra.mxu0 0
    %924 = vmatprep.subr.bf16.mxu0 0
    %925 = vmatpush1.bf16.msra.mxu0 0
    %926 = vmatprep.subr.bf16.mxu0 0
    %927 = vmatpush1.bf16.msra.mxu0 0
    %928 = vmatprep.subr.bf16.mxu0 0
    %929 = vmatpush1.bf16.msra.mxu0 0
    %930 = vmatprep.subr.bf16.mxu0 0
    %931 = vmatpush1.bf16.msra.mxu0 0
    %932 = vmatprep.mubr.bf16.mxu0 0
    %933 = vmatmul.mubr.bf16.gmra.mrb[0].mxu0 %v707
    %v934 = vpop.f32.mrb[0].mxu0
    %v935 = vadd.f32 0.0, %v934
    %v936 = vpop.f32.mrb[0].mxu0
    %v937 = vpop.f32.mrb[0].mxu0
    %v938 = vadd.f32 0.0, %v937
    %v939 = vpop.f32.mrb[0].mxu0
    %940 = vmatprep.mubr.bf16.mxu0 0
    %941 = vmatmul.mubr.bf16.gmra.mrb[0].mxu0 %v708
    %v942 = vpop.f32.mrb[0].mxu0
    %v943 = vadd.f32 0.0, %v942
    %v944 = vpop.f32.mrb[0].mxu0
    %v945 = vpop.f32.mrb[0].mxu0
    %v946 = vadd.f32 0.0, %v945
    %v947 = vpop.f32.mrb[0].mxu0
    %948 = vmatprep.mubr.bf16.mxu0 0
    %949 = vmatmul.mubr.bf16.gmra.mrb[0].mxu0 %v709
    %v950 = vpop.f32.mrb[0].mxu0
    %v951 = vadd.f32 0.0, %v950
    %v952 = vpop.f32.mrb[0].mxu0
    %v953 = vpop.f32.mrb[0].mxu0
    %v954 = vadd.f32 0.0, %v953
    %v955 = vpop.f32.mrb[0].mxu0
    %956 = vmatprep.mubr.bf16.mxu0 0
    %957 = vmatmul.mubr.bf16.gmra.mrb[0].mxu0 %v710
    %v958 = vpop.f32.mrb[0].mxu0
    %v959 = vadd.f32 0.0, %v958
    %v960 = vpop.f32.mrb[0].mxu0
    %v961 = vpop.f32.mrb[0].mxu0
    %v962 = vadd.f32 0.0, %v961
    %v963 = vpop.f32.mrb[0].mxu0
    %964 = vmatprep.mubr.bf16.mxu0 0
    %965 = vmatmul.mubr.bf16.gmra.mrb[0].mxu0 %v711
    %v966 = vpop.f32.mrb[0].mxu0
    %v967 = vadd.f32 0.0, %v966
    %v968 = vpop.f32.mrb[0].mxu0
    %v969 = vpop.f32.mrb[0].mxu0
    %v970 = vadd.f32 0.0, %v969
    %v971 = vpop.f32.mrb[0].mxu0
    %972 = vmatprep.mubr.bf16.mxu0 0
    %973 = vmatmul.mubr.bf16.gmra.mrb[0].mxu0 %v712
    %v974 = vpop.f32.mrb[0].mxu0
    %v975 = vadd.f32 0.0, %v974
    %v976 = vpop.f32.mrb[0].mxu0
    %v977 = vpop.f32.mrb[0].mxu0
    %v978 = vadd.f32 0.0, %v977
    %v979 = vpop.f32.mrb[0].mxu0
    %980 = vmatprep.mubr.bf16.mxu0 0
    %981 = vmatmul.mubr.bf16.gmra.mrb[0].mxu0 %v713
    %v982 = vpop.f32.mrb[0].mxu0
    %v983 = vadd.f32 0.0, %v982
    %v984 = vpop.f32.mrb[0].mxu0
    %v985 = vpop.f32.mrb[0].mxu0
    %v986 = vadd.f32 0.0, %v985
    %v987 = vpop.f32.mrb[0].mxu0
    %988 = vmatprep.mubr.bf16.mxu0 0
    %989 = vmatmul.mubr.bf16.gmra.mrb[0].mxu0 %v714
    %v990 = vpop.f32.mrb[0].mxu0
    %v991 = vadd.f32 0.0, %v990
    %v992 = vpop.f32.mrb[0].mxu0
    %v993 = vpop.f32.mrb[0].mxu0
    %v994 = vadd.f32 0.0, %v993
    %v995 = vpop.f32.mrb[0].mxu0
    %996 = vdwg.mxu0
    %v1013 = vunpack.c.l.b16 %v820
    %v1014 = vunpack.c.l.b16 %v821
    %v1015 = vunpack.c.l.b16 %v822
    %v1016 = vunpack.c.l.b16 %v823
    %v1017 = vunpack.c.l.b16 %v824
    %v1018 = vunpack.c.l.b16 %v825
    %v1019 = vunpack.c.l.b16 %v826
    %v1020 = vunpack.c.l.b16 %v827
    %v1021 = vunpack.c.l.b16 %v828
    %v1022 = vunpack.c.l.b16 %v829
    %v1023 = vunpack.c.l.b16 %v830
    %v1024 = vunpack.c.l.b16 %v831
    %v1025 = vunpack.c.l.b16 %v832
    %v1026 = vunpack.c.l.b16 %v833
    %v1027 = vunpack.c.l.b16 %v834
    %v1028 = vunpack.c.l.b16 %v835
    %v1029 = vpack.c.b16 %v1014, %v1013
    %v1030 = vpack.c.b16 %v1016, %v1015
    %v1031 = vpack.c.b16 %v1018, %v1017
    %v1032 = vpack.c.b16 %v1020, %v1019
    %v1033 = vpack.c.b16 %v1022, %v1021
    %v1034 = vpack.c.b16 %v1024, %v1023
    %v1035 = vpack.c.b16 %v1026, %v1025
    %v1036 = vpack.c.b16 %v1028, %v1027
    %1045 = vmatprep.subr.bf16.mxu0 0
    %1046 = vmatpush1.bf16.msra.mxu0 %v1029
    %1047 = vmatprep.subr.bf16.mxu0 0
    %1048 = vmatpush1.bf16.msra.mxu0 %v1030
    %1049 = vmatprep.subr.bf16.mxu0 0
    %1050 = vmatpush1.bf16.msra.mxu0 %v1031
    %1051 = vmatprep.subr.bf16.mxu0 0
    %1052 = vmatpush1.bf16.msra.mxu0 %v1032
    %1053 = vmatprep.subr.bf16.mxu0 0
    %1054 = vmatpush1.bf16.msra.mxu0 %v1033
    %1055 = vmatprep.subr.bf16.mxu0 0
    %1056 = vmatpush1.bf16.msra.mxu0 %v1034
    %1057 = vmatprep.subr.bf16.mxu0 0
    %1058 = vmatpush1.bf16.msra.mxu0 %v1035
    %1059 = vmatprep.subr.bf16.mxu0 0
    %1060 = vmatpush1.bf16.msra.mxu0 %v1036
    %1061 = vmatprep.subr.bf16.mxu0 0
    %1062 = vmatpush1.bf16.msra.mxu0 0
    %1063 = vmatprep.subr.bf16.mxu0 0
    %1064 = vmatpush1.bf16.msra.mxu0 0
    %1065 = vmatprep.subr.bf16.mxu0 0
    %1066 = vmatpush1.bf16.msra.mxu0 0
    %1067 = vmatprep.subr.bf16.mxu0 0
    %1068 = vmatpush1.bf16.msra.mxu0 0
    %1069 = vmatprep.subr.bf16.mxu0 0
    %1070 = vmatpush1.bf16.msra.mxu0 0
    %1071 = vmatprep.subr.bf16.mxu0 0
    %1072 = vmatpush1.bf16.msra.mxu0 0
    %1073 = vmatprep.subr.bf16.mxu0 0
    %1074 = vmatpush1.bf16.msra.mxu0 0
    %1075 = vmatprep.subr.bf16.mxu0 0
    %1076 = vmatpush1.bf16.msra.mxu0 0
    %1077 = vmatprep.mubr.bf16.mxu0 0
    %1078 = vmatmul.mubr.bf16.gmra.mrb[0].mxu0 %v812
    %v1079 = vpop.f32.mrb[0].mxu0
    %v1080 = vadd.f32 %v935, %v1079
    %v1081 = vpop.f32.mrb[0].mxu0
    %v1082 = vpop.f32.mrb[0].mxu0
    %v1083 = vadd.f32 %v938, %v1082
    %v1084 = vpop.f32.mrb[0].mxu0
    %1085 = vmatprep.mubr.bf16.mxu0 0
    %1086 = vmatmul.mubr.bf16.gmra.mrb[0].mxu0 %v813
    %v1087 = vpop.f32.mrb[0].mxu0
    %v1088 = vadd.f32 %v943, %v1087
    %v1089 = vpop.f32.mrb[0].mxu0
    %v1090 = vpop.f32.mrb[0].mxu0
    %v1091 = vadd.f32 %v946, %v1090
    %v1092 = vpop.f32.mrb[0].mxu0
    %1093 = vmatprep.mubr.bf16.mxu0 0
    %1094 = vmatmul.mubr.bf16.gmra.mrb[0].mxu0 %v814
    %v1095 = vpop.f32.mrb[0].mxu0
    %v1096 = vadd.f32 %v951, %v1095
    %v1097 = vpop.f32.mrb[0].mxu0
    %v1098 = vpop.f32.mrb[0].mxu0
    %v1099 = vadd.f32 %v954, %v1098
    %v1100 = vpop.f32.mrb[0].mxu0
    %1101 = vmatprep.mubr.bf16.mxu0 0
    %1102 = vmatmul.mubr.bf16.gmra.mrb[0].mxu0 %v815
    %v1103 = vpop.f32.mrb[0].mxu0
    %v1104 = vadd.f32 %v959, %v1103
    %v1105 = vpop.f32.mrb[0].mxu0
    %v1106 = vpop.f32.mrb[0].mxu0
    %v1107 = vadd.f32 %v962, %v1106
    %v1108 = vpop.f32.mrb[0].mxu0
    %1109 = vmatprep.mubr.bf16.mxu0 0
    %1110 = vmatmul.mubr.bf16.gmra.mrb[0].mxu0 %v816
    %v1111 = vpop.f32.mrb[0].mxu0
    %v1112 = vadd.f32 %v967, %v1111
    %v1113 = vpop.f32.mrb[0].mxu0
    %v1114 = vpop.f32.mrb[0].mxu0
    %v1115 = vadd.f32 %v970, %v1114
    %v1116 = vpop.f32.mrb[0].mxu0
    %1117 = vmatprep.mubr.bf16.mxu0 0
    %1118 = vmatmul.mubr.bf16.gmra.mrb[0].mxu0 %v817
    %v1119 = vpop.f32.mrb[0].mxu0
    %v1120 = vadd.f32 %v975, %v1119
    %v1121 = vpop.f32.mrb[0].mxu0
    %v1122 = vpop.f32.mrb[0].mxu0
    %v1123 = vadd.f32 %v978, %v1122
    %v1124 = vpop.f32.mrb[0].mxu0
    %1125 = vmatprep.mubr.bf16.mxu0 0
    %1126 = vmatmul.mubr.bf16.gmra.mrb[0].mxu0 %v818
    %v1127 = vpop.f32.mrb[0].mxu0
    %v1128 = vadd.f32 %v983, %v1127
    %v1129 = vpop.f32.mrb[0].mxu0
    %v1130 = vpop.f32.mrb[0].mxu0
    %v1131 = vadd.f32 %v986, %v1130
    %v1132 = vpop.f32.mrb[0].mxu0
    %1133 = vmatprep.mubr.bf16.mxu0 0
    %1134 = vmatmul.mubr.bf16.gmra.mrb[0].mxu0 %v819
    %v1135 = vpop.f32.mrb[0].mxu0
    %v1136 = vadd.f32 %v991, %v1135
    %v1137 = vpop.f32.mrb[0].mxu0
    %v1138 = vpop.f32.mrb[0].mxu0
    %v1139 = vadd.f32 %v994, %v1138
    %v1140 = vpop.f32.mrb[0].mxu0
    %1141 = vdwg.mxu0
    %v1142 = vld [vmem:[%s7] sm:$0x1]
    %v1144 = vlaneseq
    %v1145 = vshrl.u32 %v1144, 7
    %v1146 = vsub.s32 0, %v1145
    %v1147 = vrot.slane %v1142, %v1146
    %v1149 = vadd.f32 %v1080, %v1147
    %v1150 = vadd.f32 %v1083, %v1147
    %v1151 = vadd.f32 %v1088, %v1147
    %v1152 = vadd.f32 %v1091, %v1147
    %v1153 = vadd.f32 %v1096, %v1147
    %v1154 = vadd.f32 %v1099, %v1147
    %v1155 = vadd.f32 %v1104, %v1147
    %v1156 = vadd.f32 %v1107, %v1147
    %v1157 = vadd.f32 %v1112, %v1147
    %v1158 = vadd.f32 %v1115, %v1147
    %v1159 = vadd.f32 %v1120, %v1147
    %v1160 = vadd.f32 %v1123, %v1147
    %v1161 = vadd.f32 %v1128, %v1147
    %v1162 = vadd.f32 %v1131, %v1147
    %v1163 = vadd.f32 %v1136, %v1147
    %v1164 = vadd.f32 %v1139, %v1147
    %1165 = vst [vmem:[#allocation13] sm:$0xff] %v1149
    %1166 = vst [vmem:[#allocation13 + $0x8] sm:$0xff] %v1150
    %1167 = vst [vmem:[#allocation13 + $0x10] sm:$0xff] %v1151
    %1168 = vst [vmem:[#allocation13 + $0x18] sm:$0xff] %v1152
    %1169 = vst [vmem:[#allocation13 + $0x20] sm:$0xff] %v1153
    %1170 = vst [vmem:[#allocation13 + $0x28] sm:$0xff] %v1154
    %1171 = vst [vmem:[#allocation13 + $0x30] sm:$0xff] %v1155
    %1172 = vst [vmem:[#allocation13 + $0x38] sm:$0xff] %v1156
    %1173 = vst [vmem:[#allocation13 + $0x40] sm:$0xff] %v1157
    %1174 = vst [vmem:[#allocation13 + $0x48] sm:$0xff] %v1158
    %1175 = vst [vmem:[#allocation13 + $0x50] sm:$0xff] %v1159
    %1176 = vst [vmem:[#allocation13 + $0x58] sm:$0xff] %v1160
    %1177 = vst [vmem:[#allocation13 + $0x60] sm:$0xff] %v1161
    %1178 = vst [vmem:[#allocation13 + $0x68] sm:$0xff] %v1162
    %1179 = vst [vmem:[#allocation13 + $0x70] sm:$0xff] %v1163
    %1180 = vst [vmem:[#allocation13 + $0x78] sm:$0xff] %v1164
    // Predicated region
    $region58: #{tpu_custom_call.1} parent=1 // pred_check
      _
    $region59: #{tpu_custom_call.1} parent=1 // pred_check_branch
      %1182 = sbr.rel (0) target = $region61
    $region60: #{tpu_custom_call.1} parent=1 // pred_region
      %s1184 = ssub.s32 2048, 2048
      %1185 = vsyncadd [#allocation4], %s1184
      %s1186 = sshll.u32 [#allocation13], 4
      %s1187 = int_to_ptr.vmem [resolvable:$true] %s1186
      %1192 = dma.vmem_to_hbm [thread:$0]  %s1187, 2048, %s8, [#allocation4], 128, 128, 8
    $region61: #{tpu_custom_call.1} parent=1 // pred_fallthru
      _
    // Predicated region
    $region62: #{tpu_custom_call.1} parent=1 // pred_check
      _
    $region63: #{tpu_custom_call.1} parent=1 // pred_check_branch
      %1194 = sbr.rel (0) target = $region65
    $region64: #{tpu_custom_call.1} parent=1 // pred_region
      %1195 = dma.done [#allocation4], 2048
    $region65: #{tpu_custom_call.1} parent=1 // pred_fallthru
      _
    %1196 = vsyncpa [#allocation3], 1
    %1197 = vsyncpa [#allocation6], 1
    %1198 = vsyncpa [#allocation9], 1
    %1199 = vsyncpa [#allocation12], 1
    %1200 = vsyncpa [#allocation4], 1

</llo_original>
